<compile_context>
chip_gen: v6e
topology: v6e:2x2x1
jax: 0.10.0
libtpu: 0.0.40
codegen_flags: <defaults>
</compile_context>

<pallas_src>
import functools
import math

import jax
import jax.numpy as jnp
from jax import tree_util
from jax.experimental import pallas as pl
from jax.experimental.pallas import tpu as pltpu

BN_EPS = 1e-5
ACT_DTYPE = jnp.bfloat16          # activation / weight GEMM dtype (f32 accumulate)


def _round_up(x, m):
    return (x + m - 1) // m * m


def _device_kind():
    try:
        return jax.devices()[0].device_kind.lower()
    except Exception:
        return ""


_KIND = _device_kind()
_IS_V7 = ("v7" in _KIND) or ("7x" in _KIND)

TM_MAX = 512 if _IS_V7 else 1024        # v7x: smaller M tiles keep both TCs busy
TK_MAX = 3456 if _IS_V7 else 1024       # v7x: fewer K steps vs. 3.2 TB/s HBM


def _probe_buffered():
    """Runtime probe: does this JAX support pipeline_mode=pl.Buffered on TPU?"""
    if not hasattr(pl, "Buffered"):
        return False
    try:
        spec = pl.BlockSpec((8, 128), lambda i: (i, 0),
                            pipeline_mode=pl.Buffered(3))

        def _k(x_ref, o_ref):
            o_ref[...] = x_ref[...]

        fn = pl.pallas_call(
            _k,
            out_shape=jax.ShapeDtypeStruct((32, 128), jnp.float32),
            grid_spec=pltpu.PrefetchScalarGridSpec(
                num_scalar_prefetch=0, grid=(4,),
                in_specs=[spec],
                out_specs=pl.BlockSpec((8, 128), lambda i: (i, 0))))
        jax.block_until_ready(fn(jnp.zeros((32, 128), jnp.float32)))
        return True
    except Exception:
        return False


_HAS_BUFFERED = _probe_buffered()


def _tile_k(k):
    """(tk, kp): K padded to kp = round_up(k,128); tk a 128-mult divisor of kp."""
    kp = _round_up(k, 128)
    if kp <= TK_MAX:
        return kp, kp                    # single K step
    q = kp // 128
    best = 1
    for d in range(1, TK_MAX // 128 + 1):
        if q % d == 0:
            best = d
    return best * 128, kp


def _tile_n(cout):
    """(tn, np_): carried/padded output channels = round_up(cout, 128)."""
    np_ = _round_up(cout, 128)
    if np_ % 256 == 0 and not (_IS_V7 and np_ <= 512):
        return 256, np_                  # single-TC chips: fewer j steps
    return 128, np_                      # v7x small-N: give both cores j work


# -----------------------------------------------------------------------------
# Fused GEMM (+ shift, + residual, + ReLU) Pallas kernels.
# BN scale is pre-folded into the weight columns; the shift seeds the
# accumulator, so the epilogue only does (residual) + (relu) in f32.
# -----------------------------------------------------------------------------
def _make_gemm_kernel_multi(relu, has_res):
    def kernel(x_ref, w_ref, b_ref, *rest):
        if has_res:
            res_ref, o_ref, acc_ref = rest
        else:
            o_ref, acc_ref = rest
        k = pl.program_id(2)

        @pl.when(k == 0)
        def _():
            # accumulator starts at the BN shift -> no separate bias pass later
            acc_ref[...] = jnp.broadcast_to(b_ref[...], acc_ref.shape)

        acc_ref[...] += jnp.dot(x_ref[...], w_ref[...],
                                preferred_element_type=jnp.float32)

        @pl.when(k == pl.num_programs(2) - 1)
        def _():
            y = acc_ref[...]
            if has_res:
                y = y + res_ref[...].astype(jnp.float32)
            if relu:
                y = jnp.maximum(y, 0.0)
            o_ref[...] = y.astype(o_ref.dtype)

    return kernel


def _make_gemm_kernel_single(relu, has_res):
    # Single K step: no accumulator scratch, epilogue written straight out.
    def kernel(x_ref, w_ref, b_ref, *rest):
        if has_res:
            res_ref, o_ref = rest
        else:
            (o_ref,) = rest
        y = jnp.dot(x_ref[...], w_ref[...],
                    preferred_element_type=jnp.float32) + b_ref[...]
        if has_res:
            y = y + res_ref[...].astype(jnp.float32)
        if relu:
            y = jnp.maximum(y, 0.0)
        o_ref[...] = y.astype(o_ref.dtype)

    return kernel


@functools.lru_cache(maxsize=None)
def _gemm_callable(mp, kp, np_, tm, tn, tk, relu, has_res, out_dtype):
    ksteps = kp // tk
    if ksteps == 1:
        kernel = _make_gemm_kernel_single(relu, has_res)
        grid = (mp // tm, np_ // tn)
        in_specs = [
            pl.BlockSpec((tm, kp), lambda i, j: (i, 0)),      # activations (bf16)
            pl.BlockSpec((kp, tn), lambda i, j: (0, j)),      # weights (bf16)
            pl.BlockSpec((1, tn), lambda i, j: (0, j)),       # shift (f32)
        ]
        if has_res:
            in_specs.append(pl.BlockSpec((tm, tn), lambda i, j: (i, j)))
        out_specs = pl.BlockSpec((tm, tn), lambda i, j: (i, j))
        scratch = []
        sem = ("parallel", "parallel")
    else:
        kernel = _make_gemm_kernel_multi(relu, has_res)
        grid = (mp // tm, np_ // tn, ksteps)
        if _HAS_BUFFERED and ksteps >= 3:
            # weight-streamed GEMMs: keep weight DMA continuous across K steps
            w_spec = pl.BlockSpec((tk, tn), lambda i, j, k: (k, j),
                                  pipeline_mode=pl.Buffered(3))
        else:
            w_spec = pl.BlockSpec((tk, tn), lambda i, j, k: (k, j))
        in_specs = [
            pl.BlockSpec((tm, tk), lambda i, j, k: (i, k)),
            w_spec,
            pl.BlockSpec((1, tn), lambda i, j, k: (0, j)),
        ]
        if has_res:
            in_specs.append(pl.BlockSpec((tm, tn), lambda i, j, k: (i, j)))
        out_specs = pl.BlockSpec((tm, tn), lambda i, j, k: (i, j))
        scratch = [pltpu.VMEM((tm, tn), jnp.float32)]
        sem = ("parallel", "parallel", "arbitrary")
    return pl.pallas_call(
        kernel,
        out_shape=jax.ShapeDtypeStruct((mp, np_), out_dtype),
        grid_spec=pltpu.PrefetchScalarGridSpec(
            num_scalar_prefetch=0, grid=grid,
            in_specs=in_specs, out_specs=out_specs,
            scratch_shapes=scratch),
        compiler_params=pltpu.CompilerParams(
            dimension_semantics=sem,
            vmem_limit_bytes=32 * 1024 * 1024),
    )


# -----------------------------------------------------------------------------
# Parameter container: pre-padded bf16 weight + f32 shift + static tiling meta.
# Registered as a pytree so the ints stay static under jax.jit.
# -----------------------------------------------------------------------------
@tree_util.register_pytree_node_class
class ConvParam:
    def __init__(self, w, shift, meta):
        self.w = w            # (kp, np_) bf16, BN scale folded in, pad rows zero
        self.shift = shift    # (1, np_) f32
        self.meta = meta      # (kh, kw, kp, np_, tk, tn, cout)

    def tree_flatten(self):
        return (self.w, self.shift), self.meta

    @classmethod
    def tree_unflatten(cls, meta, children):
        return cls(children[0], children[1], meta)


# -----------------------------------------------------------------------------
# Convolution glue (im2col) around the Pallas GEMM
# -----------------------------------------------------------------------------
def im2col(x, kh, kw, stride, pad):
    # TODO(synk): 3x3 convs still materialize the kh*kw-expanded patch tensor in
    # HBM; in-kernel tap gathering would cut activation traffic ~9x.
    n, h, w, c = x.shape
    if pad:
        x = jnp.pad(x, ((0, 0), (pad, pad), (pad, pad), (0, 0)))
    ho = (h + 2 * pad - kh) // stride + 1
    wo = (w + 2 * pad - kw) // stride + 1
    cols = []
    for i in range(kh):
        for j in range(kw):
            cols.append(x[:, i:i + stride * ho:stride, j:j + stride * wo:stride, :])
    patches = cols[0] if len(cols) == 1 else jnp.concatenate(cols, axis=-1)
    return patches.reshape(n * ho * wo, kh * kw * c), (n, ho, wo)


def conv_bn_act(x, p, stride=1, pad=0, relu=True, residual=None,
                out_dtype=ACT_DTYPE):
    kh, kw, kp, np_, tk, tn, _ = p.meta
    if kh == 1 and kw == 1 and stride == 1 and pad == 0:
        n, h, w, c = x.shape
        patches, ho, wo = x.reshape(n * h * w, c), h, w     # no im2col, no copy
    else:
        patches, (n, ho, wo) = im2col(x, kh, kw, stride, pad)
    m, k = patches.shape
    tm = min(TM_MAX, _round_up(m, 16))          # bf16 sublane packing = 16
    mp = _round_up(m, tm)
    if (mp, kp) != (m, k):                      # only stem (K) / 2x2 stages (M)
        patches = jnp.pad(patches, ((0, mp - m), (0, kp - k)))
    args = [patches, p.w, p.shift]
    if residual is not None:
        res = residual.reshape(m, np_)          # residual is carried at np_ ch.
        if mp != m:
            res = jnp.pad(res, ((0, mp - m), (0, 0)))
        args.append(res)
    out = _gemm_callable(mp, kp, np_, tm, tn, tk, bool(relu),
                         residual is not None, out_dtype)(*args)
    if mp != m:
        out = out[:m]
    # output stays channel-padded (extra columns are exact zeros): no slice
    return out.reshape(n, ho, wo, np_)


def maxpool3x3s2(x):  # NHWC, kernel 3, stride 2, padding 1 (PyTorch semantics)
    return jax.lax.reduce_window(
        x, jnp.array(-jnp.inf, x.dtype), jax.lax.max,
        window_dimensions=(1, 3, 3, 1),
        window_strides=(1, 2, 2, 1),
        padding=((0, 0), (1, 1), (1, 1), (0, 0)))


def _interp_matrix(n_in, n_out):
    # align_corners=True bilinear weights as a dense (n_out, n_in) matrix.
    if n_out == 1:
        pos = jnp.zeros((1,), jnp.float32)
    else:
        pos = jnp.arange(n_out, dtype=jnp.float32) * ((n_in - 1) / (n_out - 1))
    idx = jnp.arange(n_in, dtype=jnp.float32)
    return jnp.maximum(0.0, 1.0 - jnp.abs(pos[:, None] - idx[None, :]))


def bilinear_ac(x, oh, ow):  # bilinear resize, align_corners=True, NHWC
    n, h, w, c = x.shape
    if (oh, ow) == (h, w):
        return x
    # keep activations bf16; accumulate in f32 via preferred_element_type
    wy = _interp_matrix(h, oh).astype(x.dtype)
    wx = _interp_matrix(w, ow).astype(x.dtype)
    y = jnp.einsum('oh,nhwc->nowc', wy, x,
                   preferred_element_type=jnp.float32).astype(x.dtype)
    y = jnp.einsum('pw,nowc->nopc', wx, y,
                   preferred_element_type=jnp.float32)
    return y.astype(x.dtype)


# -----------------------------------------------------------------------------
# Deterministic parameter construction (synthetic init; no checkpoint loading)
# -----------------------------------------------------------------------------
class ParamRNG:
    def __init__(self, seed):
        self._key = jax.random.PRNGKey(seed)

    def next(self):
        self._key, sub = jax.random.split(self._key)
        return sub


def _seg(c):
    """Channel segment: c real channels carried padded to round_up(c, 128)."""
    return (c, _round_up(c, 128))


def make_conv(rng, kh, kw, segments, cout, bn=True, bias=False):
    """segments: list of (real, carried) channel groups making up the input."""
    cin_real = sum(r for r, _ in segments)
    carried = sum(c for _, c in segments)
    taps = kh * kw
    std = math.sqrt(2.0 / (taps * cin_real))
    blocks = []
    for r, c in segments:
        wseg = jax.random.normal(rng.next(), (taps, r, cout), jnp.float32) * std
        if c > r:     # pad channels get exactly-zero weight rows (stay inert)
            wseg = jnp.pad(wseg, ((0, 0), (0, c - r), (0, 0)))
        blocks.append(wseg)
    w = jnp.concatenate(blocks, axis=1).reshape(taps * carried, cout)
    if bn:
        # TODO(synk): eval-mode BN with synthetic running stats (mean 0, var 1);
        # a real checkpoint needs scale=gamma/sqrt(var+eps), shift=beta-mean*scale.
        scale = jnp.full((cout,), 1.0 / math.sqrt(1.0 + BN_EPS), jnp.float32)
        shift = jnp.zeros((cout,), jnp.float32)
    else:
        scale = jnp.ones((cout,), jnp.float32)
        shift = (jax.random.normal(rng.next(), (cout,), jnp.float32) * 0.01
                 if bias else jnp.zeros((cout,), jnp.float32))
    tk, kp = _tile_k(taps * carried)
    tn, np_ = _tile_n(cout)
    # Fold BN scale into the weight columns, pre-pad to tile multiples, cast bf16.
    wp = jnp.pad(w * scale[None, :],
                 ((0, kp - taps * carried), (0, np_ - cout)))
    bp = jnp.pad(shift.reshape(1, cout), ((0, 0), (0, np_ - cout)))
    return ConvParam(wp.astype(ACT_DTYPE), bp,
                     (kh, kw, kp, np_, tk, tn, cout))


def make_bottleneck(rng, cin_seg, width, downsample):
    w4 = width * 4
    p = {"conv1": make_conv(rng, 1, 1, [cin_seg], width),
         "conv2": make_conv(rng, 3, 3, [_seg(width)], width),
         "conv3": make_conv(rng, 1, 1, [_seg(width)], w4)}
    if downsample:
        p["down"] = make_conv(rng, 1, 1, [cin_seg], w4)
    return p


def make_layer(rng, cin_seg, width, blocks):
    layer = [make_bottleneck(rng, cin_seg, width, True)]
    for _ in range(blocks - 1):
        layer.append(make_bottleneck(rng, _seg(width * 4), width, False))
    return layer


def make_params(seed=0, num_classes=2):
    rng = ParamRNG(seed)
    p = {}
    # Stem keeps its 3 real input channels un-padded (channel-padding the image
    # to 128 would inflate K/weights 42x); its K is padded 147 -> 256 instead.
    p["stem"] = make_conv(rng, 7, 7, [(3, 3)], 64)            # conv1 of ResNet50
    p["layer1"] = make_layer(rng, _seg(64), 64, 3)
    p["layer2"] = make_layer(rng, _seg(256), 128, 4)
    p["layer3"] = make_layer(rng, _seg(512), 256, 6)
    p["layer4"] = make_layer(rng, _seg(1024), 512, 3)
    p["dec4"] = {"conv1": make_conv(rng, 3, 3, [_seg(2048), _seg(1024)], 512),
                 "conv2": make_conv(rng, 3, 3, [_seg(512)], 512)}
    p["dec3"] = {"conv1": make_conv(rng, 3, 3, [_seg(512), _seg(512)], 256),
                 "conv2": make_conv(rng, 3, 3, [_seg(256)], 256)}
    p["dec2"] = {"conv1": make_conv(rng, 3, 3, [_seg(256), _seg(256)], 128),
                 "conv2": make_conv(rng, 3, 3, [_seg(128)], 128)}
    p["dec1"] = {"conv1": make_conv(rng, 3, 3, [_seg(128), _seg(64)], 64),
                 "conv2": make_conv(rng, 3, 3, [_seg(64)], 64)}
    p["seg"] = make_conv(rng, 3, 3, [_seg(64)], num_classes, bn=False, bias=True)
    return p


# -----------------------------------------------------------------------------
# Network forward (single jax.jit program; NCHW in/out to match PyTorch)
# -----------------------------------------------------------------------------
def bottleneck_fwd(x, p, stride):
    identity = x
    out = conv_bn_act(x, p["conv1"], relu=True)
    out = conv_bn_act(out, p["conv2"], stride=stride, pad=1, relu=True)
    if "down" in p:
        identity = conv_bn_act(x, p["down"], stride=stride, relu=False)
    # relu(bn3(conv3(out)) + identity), fully fused in the Pallas GEMM epilogue
    return conv_bn_act(out, p["conv3"], relu=True, residual=identity)


def run_layer(x, layer, stride):
    x = bottleneck_fwd(x, layer[0], stride)
    for blk in layer[1:]:
        x = bottleneck_fwd(x, blk, 1)
    return x


def decoder_block(x, skip, p):
    x = bilinear_ac(x, x.shape[1] * 2, x.shape[2] * 2)
    if x.shape[1:3] != skip.shape[1:3]:
        skip = bilinear_ac(skip, x.shape[1], x.shape[2])
    x = jnp.concatenate([x, skip], axis=-1)        # torch.cat([x, skip], dim=1)
    x = conv_bn_act(x, p["conv1"], pad=1, relu=True)
    x = conv_bn_act(x, p["conv2"], pad=1, relu=True)
    return x


def unet_resnet50_forward(x_nchw, params):
    x = jnp.transpose(x_nchw, (0, 2, 3, 1)).astype(ACT_DTYPE)   # NCHW -> NHWC
    oh, ow = x.shape[1], x.shape[2]

    # encoder stage 0: conv7x7/s2 + BN + ReLU + maxpool3x3/s2
    x0 = conv_bn_act(x, params["stem"], stride=2, pad=3, relu=True)
    x0 = maxpool3x3s2(x0)
    x1 = run_layer(x0, params["layer1"], 1)
    x2 = run_layer(x1, params["layer2"], 2)
    x3 = run_layer(x2, params["layer3"], 2)
    x4 = run_layer(x3, params["layer4"], 2)

    d = decoder_block(x4, x3, params["dec4"])
    d = decoder_block(d, x2, params["dec3"])
    d = decoder_block(d, x1, params["dec2"])
    d = decoder_block(d, x0, params["dec1"])

    d = bilinear_ac(d, oh, ow)
    out = conv_bn_act(d, params["seg"], pad=1, relu=False, out_dtype=jnp.float32)
    num_classes = params["seg"].meta[-1]
    out = out[..., :num_classes]                   # drop carried pad channels
    return jnp.transpose(out, (0, 3, 1, 2))        # NHWC -> NCHW


# -----------------------------------------------------------------------------
if __name__ == "__main__":
    # Quick numerical check of the fused GEMM conv path (multi-K-step + residual).
    chk_rng = ParamRNG(123)
    pc = make_conv(chk_rng, 3, 3, [(512, 512)], 64)
    kx, kr = jax.random.split(jax.random.PRNGKey(1))
    xs = jax.random.normal(kx, (1, 8, 8, 512), jnp.float32).astype(ACT_DTYPE)
    rs = jax.random.normal(kr, (1, 8, 8, 128), jnp.float32).astype(ACT_DTYPE)
    y = jax.jit(lambda a, b: conv_bn_act(a, pc, pad=1, relu=True, residual=b))(xs, rs)
    patches_ref, _ = im2col(xs, 3, 3, 1, 1)
    ref = jnp.maximum(
        patches_ref.astype(jnp.float32) @ pc.w.astype(jnp.float32)
        + pc.shift + rs.reshape(64, 128).astype(jnp.float32), 0.0)
    err = float(jnp.max(jnp.abs(
        y.reshape(64, 128).astype(jnp.float32) - ref)))
    assert err < 0.1, f"fused GEMM kernel mismatch: max abs err = {err}"

    # Full forward pass (one fused jit program end-to-end).
    params = make_params(seed=0, num_classes=2)
    x = jax.random.normal(jax.random.PRNGKey(0), (1, 3, 64, 64), jnp.float32)
    fwd = jax.jit(unet_resnet50_forward)
    out = jax.block_until_ready(fwd(x, params))
    assert out.shape == (1, 2, 64, 64), out.shape
    assert bool(jnp.all(jnp.isfinite(out)))
    print("KERNEL_OK")
</pallas_src>

<mosaic_0001>
module attributes {stable_mosaic.version = 11 : i64} {
  func.func @kernel(%arg0: i32, %arg1: i32, %arg2: i32, %arg3: memref<64x768xbf16, #tpu.memory_space<vmem>>, %arg4: memref<768x128xbf16, #tpu.memory_space<vmem>>, %arg5: memref<1x128xf32, #tpu.memory_space<vmem>>, %arg6: memref<64x128xbf16, #tpu.memory_space<vmem>>, %arg7: memref<64x128xbf16, #tpu.memory_space<vmem>>, %arg8: memref<64x128xf32, #tpu.memory_space<vmem>>) attributes {dimension_semantics = [#tpu.dimension_semantics<parallel>, #tpu.dimension_semantics<parallel>, #tpu.dimension_semantics<arbitrary>], iteration_bounds = array<i64: 1, 1, 6>, scalar_prefetch = 0 : i64, scratch_operands = 1 : i64, tpu.core_type = #tpu.core_type<tc>, window_params = [{transform_indices = @transform_0, window_bounds = array<i64: 64, 768>}, {transform_indices = @transform_1, window_bounds = array<i64: 768, 128>}, {transform_indices = @transform_2, window_bounds = array<i64: 1, 128>}, {transform_indices = @transform_3, window_bounds = array<i64: 64, 128>}, {transform_indices = @transform_4, window_bounds = array<i64: 64, 128>}]} {
    %c0_i32 = arith.constant 0 : i32
    %0 = arith.cmpi eq, %arg2, %c0_i32 : i32
    %1 = arith.extui %0 : i1 to i32
    %c0_i32_0 = arith.constant 0 : i32
    %2 = arith.cmpi ne, %1, %c0_i32_0 : i32
    scf.if %2 {
      %c0_9 = arith.constant 0 : index
      %c0_10 = arith.constant 0 : index
      %12 = vector.load %arg5[%c0_9, %c0_10] : memref<1x128xf32, #tpu.memory_space<vmem>>, vector<1x128xf32>
      %13 = vector.shape_cast %12 : vector<1x128xf32> to vector<1x128xf32>
      %14 = vector.broadcast %13 : vector<1x128xf32> to vector<64x128xf32>
      %c0_11 = arith.constant 0 : index
      %c0_12 = arith.constant 0 : index
      %15 = vector.load %arg8[%c0_11, %c0_12] : memref<64x128xf32, #tpu.memory_space<vmem>>, vector<64x128xf32>
      tpu.vector_store %arg8[%c0_11, %c0_12], %14 {strides = array<i32>} : memref<64x128xf32, #tpu.memory_space<vmem>>, vector<64x128xf32>,
    } else {
    }
    %c0 = arith.constant 0 : index
    %c0_1 = arith.constant 0 : index
    %3 = vector.load %arg8[%c0, %c0_1] : memref<64x128xf32, #tpu.memory_space<vmem>>, vector<64x128xf32>
    %c0_2 = arith.constant 0 : index
    %c0_3 = arith.constant 0 : index
    %4 = vector.load %arg3[%c0_2, %c0_3] : memref<64x768xbf16, #tpu.memory_space<vmem>>, vector<64x768xbf16>
    %c0_4 = arith.constant 0 : index
    %c0_5 = arith.constant 0 : index
    %5 = vector.load %arg4[%c0_4, %c0_5] : memref<768x128xbf16, #tpu.memory_space<vmem>>, vector<768x128xbf16>
    %cst = arith.constant dense<0.000000e+00> : vector<64x128xf32>
    %6 = tpu.matmul %4, %5, %cst {dimension_numbers = #tpu.dot_dimension_numbers<[1], [0], [0], [1], [0, 0, 1, 1], [], []>} : vector<64x768xbf16>, vector<768x128xbf16>, vector<64x128xf32> -> vector<64x128xf32>
    %7 = arith.addf %3, %6 : vector<64x128xf32>
    %c0_6 = arith.constant 0 : index
    %c0_7 = arith.constant 0 : index
    %8 = vector.load %arg8[%c0_6, %c0_7] : memref<64x128xf32, #tpu.memory_space<vmem>>, vector<64x128xf32>
    tpu.vector_store %arg8[%c0_6, %c0_7], %7 {strides = array<i32>} : memref<64x128xf32, #tpu.memory_space<vmem>>, vector<64x128xf32>,
    %c5_i32 = arith.constant 5 : i32
    %9 = arith.cmpi eq, %arg2, %c5_i32 : i32
    %10 = arith.extui %9 : i1 to i32
    %c0_i32_8 = arith.constant 0 : i32
    %11 = arith.cmpi ne, %10, %c0_i32_8 : i32
    scf.if %11 {
      %c0_9 = arith.constant 0 : index
      %c0_10 = arith.constant 0 : index
      %12 = vector.load %arg8[%c0_9, %c0_10] : memref<64x128xf32, #tpu.memory_space<vmem>>, vector<64x128xf32>
      %c0_11 = arith.constant 0 : index
      %c0_12 = arith.constant 0 : index
      %13 = vector.load %arg6[%c0_11, %c0_12] : memref<64x128xbf16, #tpu.memory_space<vmem>>, vector<64x128xbf16>
      %14 = arith.extf %13 : vector<64x128xbf16> to vector<64x128xf32>
      %15 = arith.addf %12, %14 : vector<64x128xf32>
      %cst_13 = arith.constant 0.000000e+00 : f32
      %16 = vector.broadcast %cst_13 : f32 to vector<64x128xf32>
      %17 = arith.maximumf %15, %16 : vector<64x128xf32>
      %18 = arith.truncf %17 : vector<64x128xf32> to vector<64x128xbf16>
      %c0_14 = arith.constant 0 : index
      %c0_15 = arith.constant 0 : index
      %19 = vector.load %arg7[%c0_14, %c0_15] : memref<64x128xbf16, #tpu.memory_space<vmem>>, vector<64x128xbf16>
      tpu.vector_store %arg7[%c0_14, %c0_15], %18 {strides = array<i32>} : memref<64x128xbf16, #tpu.memory_space<vmem>>, vector<64x128xbf16>,
    } else {
    }
    return
  }
  func.func @transform_0(%arg0: i32, %arg1: i32, %arg2: i32) -> (i32, i32) {
    %c0_i32 = arith.constant 0 : i32
    return %arg0, %arg2 : i32, i32
  }
  func.func @transform_1(%arg0: i32, %arg1: i32, %arg2: i32) -> (i32, i32) {
    %c0_i32 = arith.constant 0 : i32
    return %arg2, %arg1 : i32, i32
  }
  func.func @transform_2(%arg0: i32, %arg1: i32, %arg2: i32) -> (i32, i32) {
    %c0_i32 = arith.constant 0 : i32
    %c0_i32_0 = arith.constant 0 : i32
    return %c0_i32, %arg1 : i32, i32
  }
  func.func @transform_3(%arg0: i32, %arg1: i32, %arg2: i32) -> (i32, i32) {
    %c0_i32 = arith.constant 0 : i32
    return %arg0, %arg1 : i32, i32
  }
  func.func @transform_4(%arg0: i32, %arg1: i32, %arg2: i32) -> (i32, i32) {
    %c0_i32 = arith.constant 0 : i32
    return %arg0, %arg1 : i32, i32
  }
}

</mosaic_0001>

<llo_original>
// kernel: _lambda_.1
$region0: #{_lambda_.1}
  #allocation0 [shape = 'u32[]', space=smem, size = 0x4, offset = 0x4, fixed_abs, tag = 'smem constant byte address 0x4 - core index']
  #allocation1 [shape = 'u32[144,128]{1,0:T(1,128)}', space=vmem, size = 0x12000, scoped, tag = 'internal scratch']
  #allocation2 [shape = 'f32[64,128]{1,0:T(8,128)}', space=vmem, size = 0x8000, scoped, tag = 'scratch operand']
  %s0 = inlined_call_operand.vmem [shape: bf16[64,4608], index: 0, kind: input, shape index: {}]
  %s1 = inlined_call_operand.vmem [shape: bf16[4608,128], index: 1, kind: input, shape index: {}]
  %s2 = inlined_call_operand.vmem [shape: f32[1,128], index: 2, kind: input, shape index: {}]
  %s3 = inlined_call_operand.hbm [shape: bf16[64,128], index: 3, kind: input, shape index: {}]
  %s4 = inlined_call_operand.hbm [shape: bf16[64,128], index: 4, kind: output, shape index: {}]
  %s5 = sld [smem:[#allocation0]]
  $region84: #{_lambda_.1} parent=0
    _
  %s7 = ssub.s32 1, %s5
  %s8 = scalar_select 0, %s7, %s5
  $region1: #{_lambda_.1} parent=0
    #allocation3 [shape = 'u8[196608]{0}', space=vmem, size = 0x30000, scoped, tag = 'input window, operand 0']
    #allocation4 [shape = 'u8[16384]{0}', space=vmem, size = 0x4000, scoped, tag = 'input window, operand 3, single buffered']
    #allocation5 [shape = 's32[2]{0}', space=sflag, size = 0x8, scoped, tag = 'scoped memory for _lambda_.1']
    #allocation6 [shape = 's32[2]{0}', space=sflag, size = 0x8, scoped, tag = 'scoped memory for _lambda_.1']
    #allocation7 [shape = 'u8[16384]{0}', space=vmem, size = 0x4000, scoped, tag = 'output window, operand 0, single buffered']
    %9 = vsyncpa [#allocation5], 0
    %10 = vsyncpa [#allocation6], 0
    loop: start=0, step=1, limit=8
    $region2: #{_lambda_.1} parent=1 // loop_pre_header
      _
    $region3: #{_lambda_.1} parent=1 // loop_header
      %s12 = sphi 0, %s16
      %p13 = scmp.ge.s32.totalorder %s12, 8
      %s19 = sphi 0, %s38
      %s20 = sphi 0, %s34
      %s21 = sphi 0, %s30
      %s22 = sphi 0, %s19
      %s23 = sphi 0, %s20
      %s24 = sphi 0, %s21
      %s25 = sphi 0, %s22
      %s26 = sphi 0, %s23
      %s27 = sphi 0, %s24
      %s43 = sphi 0, %s45
      %s46 = sphi 0, %s43
      %s47 = sphi 0, %s46
      %s63 = sphi 0, %s47
      %s71 = sphi 0, %s73
      %s74 = sphi 0, %s71
      %s75 = sphi 0, %s74
      %s91 = sphi 0, %s75
      %s97 = sphi 0, %s99
      %s100 = sphi 0, %s97
      %s101 = sphi 0, %s100
      %s117 = sphi 0, %s101
      %s125 = sphi 0, %s127
      %s128 = sphi 0, %s125
      %s129 = sphi 0, %s128
      %s145 = sphi 0, %s129
      %s153 = sphi 0, %s155
      %s156 = sphi 0, %s153
      %s157 = sphi 0, %s156
      %s173 = sphi 0, %s157
    $region4: #{_lambda_.1} parent=1 // loop_header_branch
      %15 = sbr.rel (%p13) target = $region8
    $region5: #{_lambda_.1} parent=1 // loop_body
      %s17 = ssub.s32 %s12, 1
      %s18 = ssub.s32 %s12, 2
      %s28 = sadd.s32 1, %s21
      %p29 = scmp.ge.s32.totalorder %s28, 6
      %s30 = scalar_select %p29, 0, %s28
      %s31 = sadd.s32 1, %s20
      %s32 = scalar_select %p29, %s31, %s20
      %p33 = scmp.ge.s32.totalorder %s32, 1
      %s34 = scalar_select %p33, 0, %s32
      %s35 = sadd.s32 1, %s19
      %s36 = scalar_select %p33, %s35, %s19
      %p37 = scmp.ge.s32.totalorder %s36, 1
      %s38 = scalar_select %p37, 0, %s36
      %s39 = ssub.s32 %s19, %s38
      %s40 = ssub.s32 %s21, %s30
      %s41 = sor.u32 %s39, %s40
      %p42 = scmp.eq.s32.totalorder %s41, 0
      %s44 = sadd.s32 %s43, 1
      %s45 = scalar_select %p42, %s43, %s44
      %p48 = pneg %p42
      %p49 = scmp.eq.s32.totalorder %s12, 5
      %p50 = por %p48, %p49
      %p51 = scmp.ne.s32.totalorder %s43, %s46
      %p52 = scmp.eq.s32.totalorder %s12, 0
      %p53 = por %p51, %p52
      %p54 = scmp.ne.s32.totalorder %s43, %s46
      %p55 = scmp.eq.s32.totalorder %s17, 5
      %p56 = por %p54, %p55
      %p57 = scmp.ne.s32.totalorder %s46, %s47
      %p58 = scmp.eq.s32.totalorder %s17, 0
      %p59 = por %p57, %p58
      %p60 = scmp.ne.s32.totalorder %s46, %s47
      %p61 = scmp.eq.s32.totalorder %s18, 5
      %p62 = por %p60, %p61
      %p64 = scmp.ne.s32.totalorder %s47, %s63
      %p65 = scmp.eq.s32.totalorder %s18, 0
      %p66 = por %p64, %p65
      %s67 = ssub.s32 %s21, %s30
      %s68 = ssub.s32 %s20, %s34
      %s69 = sor.u32 %s67, %s68
      %p70 = scmp.eq.s32.totalorder %s69, 0
      %s72 = sadd.s32 %s71, 1
      %s73 = scalar_select %p70, %s71, %s72
      %p76 = pneg %p70
      %p77 = scmp.eq.s32.totalorder %s12, 5
      %p78 = por %p76, %p77
      %p79 = scmp.ne.s32.totalorder %s71, %s74
      %p80 = scmp.eq.s32.totalorder %s12, 0
      %p81 = por %p79, %p80
      %p82 = scmp.ne.s32.totalorder %s71, %s74
      %p83 = scmp.eq.s32.totalorder %s17, 5
      %p84 = por %p82, %p83
      %p85 = scmp.ne.s32.totalorder %s74, %s75
      %p86 = scmp.eq.s32.totalorder %s17, 0
      %p87 = por %p85, %p86
      %p88 = scmp.ne.s32.totalorder %s74, %s75
      %p89 = scmp.eq.s32.totalorder %s18, 5
      %p90 = por %p88, %p89
      %p92 = scmp.ne.s32.totalorder %s75, %s91
      %p93 = scmp.eq.s32.totalorder %s18, 0
      %p94 = por %p92, %p93
      %s95 = ssub.s32 %s20, %s34
      %p96 = scmp.eq.s32.totalorder %s95, 0
      %s98 = sadd.s32 %s97, 1
      %s99 = scalar_select %p96, %s97, %s98
      %p102 = pneg %p96
      %p103 = scmp.eq.s32.totalorder %s12, 5
      %p104 = por %p102, %p103
      %p105 = scmp.ne.s32.totalorder %s97, %s100
      %p106 = scmp.eq.s32.totalorder %s12, 0
      %p107 = por %p105, %p106
      %p108 = scmp.ne.s32.totalorder %s97, %s100
      %p109 = scmp.eq.s32.totalorder %s17, 5
      %p110 = por %p108, %p109
      %p111 = scmp.ne.s32.totalorder %s100, %s101
      %p112 = scmp.eq.s32.totalorder %s17, 0
      %p113 = por %p111, %p112
      %p114 = scmp.ne.s32.totalorder %s100, %s101
      %p115 = scmp.eq.s32.totalorder %s18, 5
      %p116 = por %p114, %p115
      %p118 = scmp.ne.s32.totalorder %s101, %s117
      %p119 = scmp.eq.s32.totalorder %s18, 0
      %p120 = por %p118, %p119
      %s121 = ssub.s32 %s19, %s38
      %s122 = ssub.s32 %s20, %s34
      %s123 = sor.u32 %s121, %s122
      %p124 = scmp.eq.s32.totalorder %s123, 0
      %s126 = sadd.s32 %s125, 1
      %s127 = scalar_select %p124, %s125, %s126
      %p130 = pneg %p124
      %p131 = scmp.eq.s32.totalorder %s12, 5
      %p132 = por %p130, %p131
      %p133 = scmp.ne.s32.totalorder %s125, %s128
      %p134 = scmp.eq.s32.totalorder %s12, 0
      %p135 = por %p133, %p134
      %p136 = scmp.ne.s32.totalorder %s125, %s128
      %p137 = scmp.eq.s32.totalorder %s17, 5
      %p138 = por %p136, %p137
      %p139 = scmp.ne.s32.totalorder %s128, %s129
      %p140 = scmp.eq.s32.totalorder %s17, 0
      %p141 = por %p139, %p140
      %p142 = scmp.ne.s32.totalorder %s128, %s129
      %p143 = scmp.eq.s32.totalorder %s18, 5
      %p144 = por %p142, %p143
      %p146 = scmp.ne.s32.totalorder %s129, %s145
      %p147 = scmp.eq.s32.totalorder %s18, 0
      %p148 = por %p146, %p147
      %s149 = ssub.s32 %s19, %s38
      %s150 = ssub.s32 %s20, %s34
      %s151 = sor.u32 %s149, %s150
      %p152 = scmp.eq.s32.totalorder %s151, 0
      %s154 = sadd.s32 %s153, 1
      %s155 = scalar_select %p152, %s153, %s154
      %p158 = pneg %p152
      %p159 = scmp.eq.s32.totalorder %s12, 5
      %p160 = por %p158, %p159
      %p161 = scmp.ne.s32.totalorder %s153, %s156
      %p162 = scmp.eq.s32.totalorder %s12, 0
      %p163 = por %p161, %p162
      %p164 = scmp.ne.s32.totalorder %s153, %s156
      %p165 = scmp.eq.s32.totalorder %s17, 5
      %p166 = por %p164, %p165
      %p167 = scmp.ne.s32.totalorder %s156, %s157
      %p168 = scmp.eq.s32.totalorder %s17, 0
      %p169 = por %p167, %p168
      %p170 = scmp.ne.s32.totalorder %s156, %s157
      %p171 = scmp.eq.s32.totalorder %s18, 5
      %p172 = por %p170, %p171
      %p174 = scmp.ne.s32.totalorder %s157, %s173
      %p175 = scmp.eq.s32.totalorder %s18, 0
      %p176 = por %p174, %p175
      %p177 = scmp.le.s32.totalorder 1, %s12
      %p178 = scmp.lt.s32.totalorder %s12, 7
      %p179 = pnand %p177, %p178
      %p180 = pneg %p179
      // Predicated region
      $region9: #{_lambda_.1} parent=5 // pred_check
        _
      $region10: #{_lambda_.1} parent=5 // pred_check_branch
        %182 = sbr.rel (%p179) target = $region12
      $region11: #{_lambda_.1} parent=5 // pred_region
        %s183 = ssub.s32 %s12, 1
        // Predicated region
        $region13: #{_lambda_.1} parent=11 // pred_check
          %p184 = pneg %p113
        $region14: #{_lambda_.1} parent=11 // pred_check_branch
          %186 = sbr.rel (%p184) target = $region16
        $region15: #{_lambda_.1} parent=11 // pred_region
          %p187 = scmp.lt.s32.totalorder %s23, 0
          %s188 = scalar_select %p187, %s23, 0
          %s189 = scalar_lea.vmem %s2, %s188
        $region16: #{_lambda_.1} parent=11 // pred_fallthru
          _
        // Predicated region
        $region17: #{_lambda_.1} parent=11 // pred_check
          %p190 = pneg %p141
        $region18: #{_lambda_.1} parent=11 // pred_check_branch
          %192 = sbr.rel (%p190) target = $region20
        $region19: #{_lambda_.1} parent=11 // pred_region
          %s193 = smul.u32 8, %s22
          %s195 = ssub.s32 512, 512
          %196 = vsyncadd [#allocation5], %s195
          %s197 = sadd.s32 %s23, %s193
          %s198 = smul.addr %s197, 64
          %s199 = scalar_lea.hbm %s3, %s198
          %s200 = sshll.u32 [#allocation4], 4
          %s201 = int_to_ptr.vmem [resolvable:$true] %s200
          %206 = dma.hbm_to_vmem [thread:$0]  %s199, 512, %s201, [#allocation5], 64, 64, 4
        $region20: #{_lambda_.1} parent=11 // pred_fallthru
          _
      $region12: #{_lambda_.1} parent=5 // pred_fallthru
        _
      %p207 = scmp.lt.s32.totalorder %s12, 6
      // Predicated region
      $region21: #{_lambda_.1} parent=5 // pred_check
        %p208 = pneg %p207
      $region22: #{_lambda_.1} parent=5 // pred_check_branch
        %210 = sbr.rel (%p208) target = $region24
      $region23: #{_lambda_.1} parent=5 // pred_region
        // Predicated region
        $region25: #{_lambda_.1} parent=23 // pred_check
          %p211 = pneg %p53
        $region26: #{_lambda_.1} parent=23 // pred_check_branch
          %213 = sbr.rel (%p211) target = $region28
        $region27: #{_lambda_.1} parent=23 // pred_region
          %s214 = sand.u32 %s43, 1
          %s215 = sand.u32 %s43, 1
          %s216 = smul.addr %s215, 192
          %s217 = scalar_lea.vmem [#allocation3], %s216
          %s218 = smul.u32 8, %s19
          %s219 = smul.u32 6, %s21
          %s220 = smul.addr %s218, 36
          %s221 = sadd.s32 %s219, %s220
          %s222 = smul.addr %s221, 4
          %s223 = scalar_lea.vmem %s0, %s222
          // Predicated region
          $region29: #{_lambda_.1} parent=27 // pred_check
            _
          $region30: #{_lambda_.1} parent=27 // pred_check_branch
            %225 = sbr.rel (0) target = $region32
          $region31: #{_lambda_.1} parent=27 // pred_region
            // Predicated region
            $region33: #{_lambda_.1} parent=31 // pred_check
              _
            $region34: #{_lambda_.1} parent=31 // pred_check_branch
              %227 = sbr.rel (0) target = $region36
            $region35: #{_lambda_.1} parent=31 // pred_region
              loop: start=0, step=1, limit=1
              $region37: #{_lambda_.1} parent=35 // loop_pre_header
                _
              $region38: #{_lambda_.1} parent=35 // loop_header
                %s229 = sphi 0, %s233
                %p230 = scmp.ge.s32.totalorder %s229, 1
                %s234 = sphi %s223, %s223
                %s235 = sphi %s217, %s217
              $region39: #{_lambda_.1} parent=35 // loop_header_branch
                %232 = sbr.rel (%p230) target = $region43
              $region40: #{_lambda_.1} parent=35 // loop_body
                %v236 = vld [vmem:[%s234] sm:$0xff]
                %237 = vst [vmem:[%s235] sm:$0xff] %v236
                %v238 = vld [vmem:[%s234 + $0x8] sm:$0xff]
                %239 = vst [vmem:[%s235 + $0x8] sm:$0xff] %v238
                %v240 = vld [vmem:[%s234 + $0x10] sm:$0xff]
                %241 = vst [vmem:[%s235 + $0x10] sm:$0xff] %v240
                %v242 = vld [vmem:[%s234 + $0x90] sm:$0xff]
                %243 = vst [vmem:[%s235 + $0x18] sm:$0xff] %v242
                %v244 = vld [vmem:[%s234 + $0x98] sm:$0xff]
                %245 = vst [vmem:[%s235 + $0x20] sm:$0xff] %v244
                %v246 = vld [vmem:[%s234 + $0xa0] sm:$0xff]
                %247 = vst [vmem:[%s235 + $0x28] sm:$0xff] %v246
                %v248 = vld [vmem:[%s234 + $0x120] sm:$0xff]
                %249 = vst [vmem:[%s235 + $0x30] sm:$0xff] %v248
                %v250 = vld [vmem:[%s234 + $0x128] sm:$0xff]
                %251 = vst [vmem:[%s235 + $0x38] sm:$0xff] %v250
                %v252 = vld [vmem:[%s234 + $0x130] sm:$0xff]
                %253 = vst [vmem:[%s235 + $0x40] sm:$0xff] %v252
                %v254 = vld [vmem:[%s234 + $0x1b0] sm:$0xff]
                %255 = vst [vmem:[%s235 + $0x48] sm:$0xff] %v254
                %v256 = vld [vmem:[%s234 + $0x1b8] sm:$0xff]
                %257 = vst [vmem:[%s235 + $0x50] sm:$0xff] %v256
                %v258 = vld [vmem:[%s234 + $0x1c0] sm:$0xff]
                %259 = vst [vmem:[%s235 + $0x58] sm:$0xff] %v258
                %v260 = vld [vmem:[%s234 + $0x240] sm:$0xff]
                %261 = vst [vmem:[%s235 + $0x60] sm:$0xff] %v260
                %v262 = vld [vmem:[%s234 + $0x248] sm:$0xff]
                %263 = vst [vmem:[%s235 + $0x68] sm:$0xff] %v262
                %v264 = vld [vmem:[%s234 + $0x250] sm:$0xff]
                %265 = vst [vmem:[%s235 + $0x70] sm:$0xff] %v264
                %v266 = vld [vmem:[%s234 + $0x2d0] sm:$0xff]
                %267 = vst [vmem:[%s235 + $0x78] sm:$0xff] %v266
                %v268 = vld [vmem:[%s234 + $0x2d8] sm:$0xff]
                %269 = vst [vmem:[%s235 + $0x80] sm:$0xff] %v268
                %v270 = vld [vmem:[%s234 + $0x2e0] sm:$0xff]
                %271 = vst [vmem:[%s235 + $0x88] sm:$0xff] %v270
                %v272 = vld [vmem:[%s234 + $0x360] sm:$0xff]
                %273 = vst [vmem:[%s235 + $0x90] sm:$0xff] %v272
                %v274 = vld [vmem:[%s234 + $0x368] sm:$0xff]
                %275 = vst [vmem:[%s235 + $0x98] sm:$0xff] %v274
                %v276 = vld [vmem:[%s234 + $0x370] sm:$0xff]
                %277 = vst [vmem:[%s235 + $0xa0] sm:$0xff] %v276
                %v278 = vld [vmem:[%s234 + $0x3f0] sm:$0xff]
                %279 = vst [vmem:[%s235 + $0xa8] sm:$0xff] %v278
                %v280 = vld [vmem:[%s234 + $0x3f8] sm:$0xff]
                %281 = vst [vmem:[%s235 + $0xb0] sm:$0xff] %v280
                %v282 = vld [vmem:[%s234 + $0x400] sm:$0xff]
                %283 = vst [vmem:[%s235 + $0xb8] sm:$0xff] %v282
              $region41: #{_lambda_.1} parent=35 // loop_footer
                %s233 = sadd.s32 1, %s229
              $region42: #{_lambda_.1} parent=35 // loop_footer_branch
                %228 = sbr.rel target = $region38
              $region43: #{_lambda_.1} parent=35 // loop_exit
                _
            $region36: #{_lambda_.1} parent=31 // pred_fallthru
              _
            // Predicated region
            $region44: #{_lambda_.1} parent=31 // pred_check
              _
            $region45: #{_lambda_.1} parent=31 // pred_check_branch
              %285 = sbr.rel target = $region47
            $region46: #{_lambda_.1} parent=31 // pred_region
              _
            $region47: #{_lambda_.1} parent=31 // pred_fallthru
              _
          $region32: #{_lambda_.1} parent=27 // pred_fallthru
            _
          %286 = vnop
        $region28: #{_lambda_.1} parent=23 // pred_fallthru
          _
        // Predicated region
        $region48: #{_lambda_.1} parent=23 // pred_check
          %p287 = pneg %p81
        $region49: #{_lambda_.1} parent=23 // pred_check_branch
          %289 = sbr.rel (%p287) target = $region51
        $region50: #{_lambda_.1} parent=23 // pred_region
          %s290 = smul.u32 96, %s21
          %p291 = scmp.lt.s32.totalorder %s290, 575
          %s292 = scalar_select %p291, %s290, 575
          %p293 = scmp.lt.s32.totalorder %s20, 0
          %s294 = scalar_select %p293, %s20, 0
          %s295 = sadd.s32 %s294, %s292
          %s296 = smul.addr %s295, 4
          %s297 = scalar_lea.vmem %s1, %s296
          %s298 = smul.u32 96, %s21
        $region51: #{_lambda_.1} parent=23 // pred_fallthru
          _
      $region24: #{_lambda_.1} parent=5 // pred_fallthru
        _
      %p299 = scmp.le.s32.totalorder 1, %s12
      %p300 = scmp.lt.s32.totalorder %s12, 7
      %p301 = pnand %p299, %p300
      %p302 = pneg %p301
      // Predicated region
      $region52: #{_lambda_.1} parent=5 // pred_check
        _
      $region53: #{_lambda_.1} parent=5 // pred_check_branch
        %304 = sbr.rel (%p301) target = $region55
      $region54: #{_lambda_.1} parent=5 // pred_region
        %s305 = ssub.s32 %s12, 1
        %s306 = sand.u32 %s46, 1
        %s307 = sand.u32 %s46, 1
        %s308 = smul.addr %s307, 192
        %s309 = scalar_lea.vmem [#allocation3], %s308
        // Predicated region
        $region56: #{_lambda_.1} parent=54 // pred_check
          %p310 = pneg %p59
        $region57: #{_lambda_.1} parent=54 // pred_check_branch
          %312 = sbr.rel (%p310) target = $region59
        $region58: #{_lambda_.1} parent=54 // pred_region
          _
        $region59: #{_lambda_.1} parent=54 // pred_fallthru
          _
        // Predicated region
        $region60: #{_lambda_.1} parent=54 // pred_check
          %p313 = pneg %p141
        $region61: #{_lambda_.1} parent=54 // pred_check_branch
          %315 = sbr.rel (%p313) target = $region63
        $region62: #{_lambda_.1} parent=54 // pred_region
          %316 = dma.done [#allocation5], 512
        $region63: #{_lambda_.1} parent=54 // pred_fallthru
          _
        %s317 = sand.u32 %s46, 1
        %s318 = sand.u32 %s46, 1
        %s319 = smul.addr %s318, 192
        %s320 = scalar_lea.vmem [#allocation3], %s319
        %p321 = pneg %p59
        %p322 = pneg %p56
        %s323 = smul.u32 96, %s24
        %p324 = scmp.lt.s32.totalorder %s323, 575
        %s325 = scalar_select %p324, %s323, 575
        %p326 = scmp.lt.s32.totalorder %s23, 0
        %s327 = scalar_select %p326, %s23, 0
        %s328 = sadd.s32 %s327, %s325
        %s329 = smul.addr %s328, 4
        %s330 = scalar_lea.vmem %s1, %s329
        %p331 = pneg %p87
        %p332 = pneg %p84
        %p333 = scmp.lt.s32.totalorder %s23, 0
        %s334 = scalar_select %p333, %s23, 0
        %s335 = scalar_lea.vmem %s2, %s334
        %p336 = pneg %p113
        %p337 = pneg %p110
        %p338 = pneg %p141
        %p339 = pneg %p138
        %p340 = pneg %p169
        %p341 = pneg %p166
        %s342 = smul.u32 8, %s22
        %s343 = smul.u32 6, %s24
        %s344 = smul.u32 96, %s24
        %p345 = scmp.lt.s32.totalorder %s344, 575
        %s346 = scalar_select %p345, %s344, 575
        %p347 = scmp.lt.s32.totalorder %s23, 0
        %s348 = scalar_select %p347, %s23, 0
        %s349 = sadd.s32 %s348, %s346
        %s350 = smul.addr %s349, 4
        %s351 = scalar_lea.vmem %s1, %s350
        %s352 = smul.u32 96, %s24
        %p353 = scmp.lt.s32.totalorder %s23, 0
        %s354 = scalar_select %p353, %s23, 0
        %s355 = scalar_lea.vmem %s2, %s354
        %s356 = smul.u32 8, %s22
        %s357 = smul.u32 8, %s22
        %p359 = scmp.eq.s32.totalorder %s24, 0
        // Predicated region
        $region64: #{_lambda_.1} parent=54 // pred_check
          %p360 = pneg %p359
        $region65: #{_lambda_.1} parent=54 // pred_check_branch
          %362 = sbr.rel (%p360) target = $region67
        $region66: #{_lambda_.1} parent=54 // pred_region
          %v363 = vld [vmem:[%s355] sm:$0x1]
          %v365 = vlaneseq
          %v366 = vshrl.u32 %v365, 7
          %v367 = vsub.s32 0, %v366
          %v368 = vrot.slane %v363, %v367
          %370 = vst [vmem:[#allocation2] sm:$0xff] %v368
          %371 = vst [vmem:[#allocation2 + $0x8] sm:$0xff] %v368
          %372 = vst [vmem:[#allocation2 + $0x10] sm:$0xff] %v368
          %373 = vst [vmem:[#allocation2 + $0x18] sm:$0xff] %v368
          %374 = vst [vmem:[#allocation2 + $0x20] sm:$0xff] %v368
          %375 = vst [vmem:[#allocation2 + $0x28] sm:$0xff] %v368
          %376 = vst [vmem:[#allocation2 + $0x30] sm:$0xff] %v368
          %377 = vst [vmem:[#allocation2 + $0x38] sm:$0xff] %v368
        $region67: #{_lambda_.1} parent=54 // pred_fallthru
          _
        %v378 = vld [vmem:[#allocation2] sm:$0xff]
        %v379 = vld [vmem:[#allocation2 + $0x8] sm:$0xff]
        %v380 = vld [vmem:[#allocation2 + $0x10] sm:$0xff]
        %v381 = vld [vmem:[#allocation2 + $0x18] sm:$0xff]
        %v382 = vld [vmem:[#allocation2 + $0x20] sm:$0xff]
        %v383 = vld [vmem:[#allocation2 + $0x28] sm:$0xff]
        %v384 = vld [vmem:[#allocation2 + $0x30] sm:$0xff]
        %v385 = vld [vmem:[#allocation2 + $0x38] sm:$0xff]
        %v386 = vld [vmem:[%s309] sm:$0xff]
        %v387 = vld [vmem:[%s309 + $0x8] sm:$0xff]
        %v388 = vld [vmem:[%s309 + $0x10] sm:$0xff]
        %v389 = vld [vmem:[%s309 + $0x18] sm:$0xff]
        %v390 = vld [vmem:[%s309 + $0x20] sm:$0xff]
        %v391 = vld [vmem:[%s309 + $0x28] sm:$0xff]
        %v392 = vld [vmem:[%s309 + $0x30] sm:$0xff]
        %v393 = vld [vmem:[%s309 + $0x38] sm:$0xff]
        %v394 = vld [vmem:[%s309 + $0x40] sm:$0xff]
        %v395 = vld [vmem:[%s309 + $0x48] sm:$0xff]
        %v396 = vld [vmem:[%s309 + $0x50] sm:$0xff]
        %v397 = vld [vmem:[%s309 + $0x58] sm:$0xff]
        %v398 = vld [vmem:[%s309 + $0x60] sm:$0xff]
        %v399 = vld [vmem:[%s309 + $0x68] sm:$0xff]
        %v400 = vld [vmem:[%s309 + $0x70] sm:$0xff]
        %v401 = vld [vmem:[%s309 + $0x78] sm:$0xff]
        %v402 = vld [vmem:[%s309 + $0x80] sm:$0xff]
        %v403 = vld [vmem:[%s309 + $0x88] sm:$0xff]
        %v404 = vld [vmem:[%s309 + $0x90] sm:$0xff]
        %v405 = vld [vmem:[%s309 + $0x98] sm:$0xff]
        %v406 = vld [vmem:[%s309 + $0xa0] sm:$0xff]
        %v407 = vld [vmem:[%s309 + $0xa8] sm:$0xff]
        %v408 = vld [vmem:[%s309 + $0xb0] sm:$0xff]
        %v409 = vld [vmem:[%s309 + $0xb8] sm:$0xff]
        %v410 = vld [vmem:[%s351] sm:$0xf]
        %v411 = vld [vmem:[%s351 + $0x4] sm:$0xf]
        %v412 = vld [vmem:[%s351 + $0x8] sm:$0xf]
        %v413 = vld [vmem:[%s351 + $0xc] sm:$0xf]
        %v414 = vld [vmem:[%s351 + $0x10] sm:$0xf]
        %v415 = vld [vmem:[%s351 + $0x14] sm:$0xf]
        %v416 = vld [vmem:[%s351 + $0x18] sm:$0xf]
        %v417 = vld [vmem:[%s351 + $0x1c] sm:$0xf]
        %v418 = vld [vmem:[%s351 + $0x20] sm:$0xf]
        %v419 = vld [vmem:[%s351 + $0x24] sm:$0xf]
        %v420 = vld [vmem:[%s351 + $0x28] sm:$0xf]
        %v421 = vld [vmem:[%s351 + $0x2c] sm:$0xf]
        %v422 = vld [vmem:[%s351 + $0x30] sm:$0xf]
        %v423 = vld [vmem:[%s351 + $0x34] sm:$0xf]
        %v424 = vld [vmem:[%s351 + $0x38] sm:$0xf]
        %v425 = vld [vmem:[%s351 + $0x3c] sm:$0xf]
        %v426 = vld [vmem:[%s351 + $0x40] sm:$0xf]
        %v427 = vld [vmem:[%s351 + $0x44] sm:$0xf]
        %v428 = vld [vmem:[%s351 + $0x48] sm:$0xf]
        %v429 = vld [vmem:[%s351 + $0x4c] sm:$0xf]
        %v430 = vld [vmem:[%s351 + $0x50] sm:$0xf]
        %v431 = vld [vmem:[%s351 + $0x54] sm:$0xf]
        %v432 = vld [vmem:[%s351 + $0x58] sm:$0xf]
        %v433 = vld [vmem:[%s351 + $0x5c] sm:$0xf]
        %v434 = vld [vmem:[%s351 + $0x60] sm:$0xf]
        %v435 = vld [vmem:[%s351 + $0x64] sm:$0xf]
        %v436 = vld [vmem:[%s351 + $0x68] sm:$0xf]
        %v437 = vld [vmem:[%s351 + $0x6c] sm:$0xf]
        %v438 = vld [vmem:[%s351 + $0x70] sm:$0xf]
        %v439 = vld [vmem:[%s351 + $0x74] sm:$0xf]
        %v440 = vld [vmem:[%s351 + $0x78] sm:$0xf]
        %v441 = vld [vmem:[%s351 + $0x7c] sm:$0xf]
        %v442 = vld [vmem:[%s351 + $0x80] sm:$0xf]
        %v443 = vld [vmem:[%s351 + $0x84] sm:$0xf]
        %v444 = vld [vmem:[%s351 + $0x88] sm:$0xf]
        %v445 = vld [vmem:[%s351 + $0x8c] sm:$0xf]
        %v446 = vld [vmem:[%s351 + $0x90] sm:$0xf]
        %v447 = vld [vmem:[%s351 + $0x94] sm:$0xf]
        %v448 = vld [vmem:[%s351 + $0x98] sm:$0xf]
        %v449 = vld [vmem:[%s351 + $0x9c] sm:$0xf]
        %v450 = vld [vmem:[%s351 + $0xa0] sm:$0xf]
        %v451 = vld [vmem:[%s351 + $0xa4] sm:$0xf]
        %v452 = vld [vmem:[%s351 + $0xa8] sm:$0xf]
        %v453 = vld [vmem:[%s351 + $0xac] sm:$0xf]
        %v454 = vld [vmem:[%s351 + $0xb0] sm:$0xf]
        %v455 = vld [vmem:[%s351 + $0xb4] sm:$0xf]
        %v456 = vld [vmem:[%s351 + $0xb8] sm:$0xf]
        %v457 = vld [vmem:[%s351 + $0xbc] sm:$0xf]
        %v458 = vld [vmem:[%s351 + $0xc0] sm:$0xf]
        %v459 = vld [vmem:[%s351 + $0xc4] sm:$0xf]
        %v460 = vld [vmem:[%s351 + $0xc8] sm:$0xf]
        %v461 = vld [vmem:[%s351 + $0xcc] sm:$0xf]
        %v462 = vld [vmem:[%s351 + $0xd0] sm:$0xf]
        %v463 = vld [vmem:[%s351 + $0xd4] sm:$0xf]
        %v464 = vld [vmem:[%s351 + $0xd8] sm:$0xf]
        %v465 = vld [vmem:[%s351 + $0xdc] sm:$0xf]
        %v466 = vld [vmem:[%s351 + $0xe0] sm:$0xf]
        %v467 = vld [vmem:[%s351 + $0xe4] sm:$0xf]
        %v468 = vld [vmem:[%s351 + $0xe8] sm:$0xf]
        %v469 = vld [vmem:[%s351 + $0xec] sm:$0xf]
        %v470 = vld [vmem:[%s351 + $0xf0] sm:$0xf]
        %v471 = vld [vmem:[%s351 + $0xf4] sm:$0xf]
        %v472 = vld [vmem:[%s351 + $0xf8] sm:$0xf]
        %v473 = vld [vmem:[%s351 + $0xfc] sm:$0xf]
        %v474 = vld [vmem:[%s351 + $0x100] sm:$0xf]
        %v475 = vld [vmem:[%s351 + $0x104] sm:$0xf]
        %v476 = vld [vmem:[%s351 + $0x108] sm:$0xf]
        %v477 = vld [vmem:[%s351 + $0x10c] sm:$0xf]
        %v478 = vld [vmem:[%s351 + $0x110] sm:$0xf]
        %v479 = vld [vmem:[%s351 + $0x114] sm:$0xf]
        %v480 = vld [vmem:[%s351 + $0x118] sm:$0xf]
        %v481 = vld [vmem:[%s351 + $0x11c] sm:$0xf]
        %v482 = vld [vmem:[%s351 + $0x120] sm:$0xf]
        %v483 = vld [vmem:[%s351 + $0x124] sm:$0xf]
        %v484 = vld [vmem:[%s351 + $0x128] sm:$0xf]
        %v485 = vld [vmem:[%s351 + $0x12c] sm:$0xf]
        %v486 = vld [vmem:[%s351 + $0x130] sm:$0xf]
        %v487 = vld [vmem:[%s351 + $0x134] sm:$0xf]
        %v488 = vld [vmem:[%s351 + $0x138] sm:$0xf]
        %v489 = vld [vmem:[%s351 + $0x13c] sm:$0xf]
        %v490 = vld [vmem:[%s351 + $0x140] sm:$0xf]
        %v491 = vld [vmem:[%s351 + $0x144] sm:$0xf]
        %v492 = vld [vmem:[%s351 + $0x148] sm:$0xf]
        %v493 = vld [vmem:[%s351 + $0x14c] sm:$0xf]
        %v494 = vld [vmem:[%s351 + $0x150] sm:$0xf]
        %v495 = vld [vmem:[%s351 + $0x154] sm:$0xf]
        %v496 = vld [vmem:[%s351 + $0x158] sm:$0xf]
        %v497 = vld [vmem:[%s351 + $0x15c] sm:$0xf]
        %v498 = vld [vmem:[%s351 + $0x160] sm:$0xf]
        %v499 = vld [vmem:[%s351 + $0x164] sm:$0xf]
        %v500 = vld [vmem:[%s351 + $0x168] sm:$0xf]
        %v501 = vld [vmem:[%s351 + $0x16c] sm:$0xf]
        %v502 = vld [vmem:[%s351 + $0x170] sm:$0xf]
        %v503 = vld [vmem:[%s351 + $0x174] sm:$0xf]
        %v504 = vld [vmem:[%s351 + $0x178] sm:$0xf]
        %v505 = vld [vmem:[%s351 + $0x17c] sm:$0xf]
        %v530 = vunpack.c.l.b16 %v386
        %v531 = vunpack.c.h.b16 %v386
        %v532 = vunpack.c.l.b16 %v387
        %v533 = vunpack.c.h.b16 %v387
        %v534 = vunpack.c.l.b16 %v388
        %v535 = vunpack.c.h.b16 %v388
        %v536 = vunpack.c.l.b16 %v389
        %v537 = vunpack.c.h.b16 %v389
        %v538 = vunpack.c.l.b16 %v390
        %v539 = vunpack.c.h.b16 %v390
        %v540 = vunpack.c.l.b16 %v391
        %v541 = vunpack.c.h.b16 %v391
        %v542 = vunpack.c.l.b16 %v392
        %v543 = vunpack.c.h.b16 %v392
        %v544 = vunpack.c.l.b16 %v393
        %v545 = vunpack.c.h.b16 %v393
        %v546 = vunpack.c.l.b16 %v394
        %v547 = vunpack.c.h.b16 %v394
        %v548 = vunpack.c.l.b16 %v395
        %v549 = vunpack.c.h.b16 %v395
        %v550 = vunpack.c.l.b16 %v396
        %v551 = vunpack.c.h.b16 %v396
        %v552 = vunpack.c.l.b16 %v397
        %v553 = vunpack.c.h.b16 %v397
        %v554 = vunpack.c.l.b16 %v398
        %v555 = vunpack.c.h.b16 %v398
        %v556 = vunpack.c.l.b16 %v399
        %v557 = vunpack.c.h.b16 %v399
        %v558 = vunpack.c.l.b16 %v400
        %v559 = vunpack.c.h.b16 %v400
        %v560 = vunpack.c.l.b16 %v401
        %v561 = vunpack.c.h.b16 %v401
        %v562 = vunpack.c.l.b16 %v402
        %v563 = vunpack.c.h.b16 %v402
        %v564 = vunpack.c.l.b16 %v403
        %v565 = vunpack.c.h.b16 %v403
        %v566 = vunpack.c.l.b16 %v404
        %v567 = vunpack.c.h.b16 %v404
        %v568 = vunpack.c.l.b16 %v405
        %v569 = vunpack.c.h.b16 %v405
        %v570 = vunpack.c.l.b16 %v406
        %v571 = vunpack.c.h.b16 %v406
        %v572 = vunpack.c.l.b16 %v407
        %v573 = vunpack.c.h.b16 %v407
        %v574 = vunpack.c.l.b16 %v408
        %v575 = vunpack.c.h.b16 %v408
        %v576 = vunpack.c.l.b16 %v409
        %v577 = vunpack.c.h.b16 %v409
        %v578 = vpack.c.b16 %v536, %v530
        %v579 = vpack.c.b16 %v537, %v531
        %v580 = vpack.c.b16 %v538, %v532
        %v581 = vpack.c.b16 %v539, %v533
        %v582 = vpack.c.b16 %v540, %v534
        %v583 = vpack.c.b16 %v541, %v535
        %v584 = vpack.c.b16 %v548, %v542
        %v585 = vpack.c.b16 %v549, %v543
        %v586 = vpack.c.b16 %v550, %v544
        %v587 = vpack.c.b16 %v551, %v545
        %v588 = vpack.c.b16 %v552, %v546
        %v589 = vpack.c.b16 %v553, %v547
        %v590 = vpack.c.b16 %v560, %v554
        %v591 = vpack.c.b16 %v561, %v555
        %v592 = vpack.c.b16 %v562, %v556
        %v593 = vpack.c.b16 %v563, %v557
        %v594 = vpack.c.b16 %v564, %v558
        %v595 = vpack.c.b16 %v565, %v559
        %v596 = vpack.c.b16 %v572, %v566
        %v597 = vpack.c.b16 %v573, %v567
        %v598 = vpack.c.b16 %v574, %v568
        %v599 = vpack.c.b16 %v575, %v569
        %v600 = vpack.c.b16 %v576, %v570
        %v601 = vpack.c.b16 %v577, %v571
        %v722 = vunpack.c.l.b16 %v410
        %v723 = vunpack.c.l.b16 %v411
        %v724 = vunpack.c.l.b16 %v412
        %v725 = vunpack.c.l.b16 %v413
        %v726 = vunpack.c.l.b16 %v414
        %v727 = vunpack.c.l.b16 %v415
        %v728 = vunpack.c.l.b16 %v416
        %v729 = vunpack.c.l.b16 %v417
        %v730 = vunpack.c.l.b16 %v418
        %v731 = vunpack.c.l.b16 %v419
        %v732 = vunpack.c.l.b16 %v420
        %v733 = vunpack.c.l.b16 %v421
        %v734 = vunpack.c.l.b16 %v422
        %v735 = vunpack.c.l.b16 %v423
        %v736 = vunpack.c.l.b16 %v424
        %v737 = vunpack.c.l.b16 %v425
        %v738 = vunpack.c.l.b16 %v426
        %v739 = vunpack.c.l.b16 %v427
        %v740 = vunpack.c.l.b16 %v428
        %v741 = vunpack.c.l.b16 %v429
        %v742 = vunpack.c.l.b16 %v430
        %v743 = vunpack.c.l.b16 %v431
        %v744 = vunpack.c.l.b16 %v432
        %v745 = vunpack.c.l.b16 %v433
        %v746 = vunpack.c.l.b16 %v434
        %v747 = vunpack.c.l.b16 %v435
        %v748 = vunpack.c.l.b16 %v436
        %v749 = vunpack.c.l.b16 %v437
        %v750 = vunpack.c.l.b16 %v438
        %v751 = vunpack.c.l.b16 %v439
        %v752 = vunpack.c.l.b16 %v440
        %v753 = vunpack.c.l.b16 %v441
        %v754 = vunpack.c.l.b16 %v442
        %v755 = vunpack.c.l.b16 %v443
        %v756 = vunpack.c.l.b16 %v444
        %v757 = vunpack.c.l.b16 %v445
        %v758 = vunpack.c.l.b16 %v446
        %v759 = vunpack.c.l.b16 %v447
        %v760 = vunpack.c.l.b16 %v448
        %v761 = vunpack.c.l.b16 %v449
        %v762 = vunpack.c.l.b16 %v450
        %v763 = vunpack.c.l.b16 %v451
        %v764 = vunpack.c.l.b16 %v452
        %v765 = vunpack.c.l.b16 %v453
        %v766 = vunpack.c.l.b16 %v454
        %v767 = vunpack.c.l.b16 %v455
        %v768 = vunpack.c.l.b16 %v456
        %v769 = vunpack.c.l.b16 %v457
        %v770 = vunpack.c.l.b16 %v458
        %v771 = vunpack.c.l.b16 %v459
        %v772 = vunpack.c.l.b16 %v460
        %v773 = vunpack.c.l.b16 %v461
        %v774 = vunpack.c.l.b16 %v462
        %v775 = vunpack.c.l.b16 %v463
        %v776 = vunpack.c.l.b16 %v464
        %v777 = vunpack.c.l.b16 %v465
        %v778 = vunpack.c.l.b16 %v466
        %v779 = vunpack.c.l.b16 %v467
        %v780 = vunpack.c.l.b16 %v468
        %v781 = vunpack.c.l.b16 %v469
        %v782 = vunpack.c.l.b16 %v470
        %v783 = vunpack.c.l.b16 %v471
        %v784 = vunpack.c.l.b16 %v472
        %v785 = vunpack.c.l.b16 %v473
        %v786 = vunpack.c.l.b16 %v474
        %v787 = vunpack.c.l.b16 %v475
        %v788 = vunpack.c.l.b16 %v476
        %v789 = vunpack.c.l.b16 %v477
        %v790 = vunpack.c.l.b16 %v478
        %v791 = vunpack.c.l.b16 %v479
        %v792 = vunpack.c.l.b16 %v480
        %v793 = vunpack.c.l.b16 %v481
        %v794 = vunpack.c.l.b16 %v482
        %v795 = vunpack.c.l.b16 %v483
        %v796 = vunpack.c.l.b16 %v484
        %v797 = vunpack.c.l.b16 %v485
        %v798 = vunpack.c.l.b16 %v486
        %v799 = vunpack.c.l.b16 %v487
        %v800 = vunpack.c.l.b16 %v488
        %v801 = vunpack.c.l.b16 %v489
        %v802 = vunpack.c.l.b16 %v490
        %v803 = vunpack.c.l.b16 %v491
        %v804 = vunpack.c.l.b16 %v492
        %v805 = vunpack.c.l.b16 %v493
        %v806 = vunpack.c.l.b16 %v494
        %v807 = vunpack.c.l.b16 %v495
        %v808 = vunpack.c.l.b16 %v496
        %v809 = vunpack.c.l.b16 %v497
        %v810 = vunpack.c.l.b16 %v498
        %v811 = vunpack.c.l.b16 %v499
        %v812 = vunpack.c.l.b16 %v500
        %v813 = vunpack.c.l.b16 %v501
        %v814 = vunpack.c.l.b16 %v502
        %v815 = vunpack.c.l.b16 %v503
        %v816 = vunpack.c.l.b16 %v504
        %v817 = vunpack.c.l.b16 %v505
        %v818 = vpack.c.b16 %v723, %v722
        %v819 = vpack.c.b16 %v725, %v724
        %v820 = vpack.c.b16 %v727, %v726
        %v821 = vpack.c.b16 %v729, %v728
        %v822 = vpack.c.b16 %v731, %v730
        %v823 = vpack.c.b16 %v733, %v732
        %v824 = vpack.c.b16 %v735, %v734
        %v825 = vpack.c.b16 %v737, %v736
        %v826 = vpack.c.b16 %v739, %v738
        %v827 = vpack.c.b16 %v741, %v740
        %v828 = vpack.c.b16 %v743, %v742
        %v829 = vpack.c.b16 %v745, %v744
        %v830 = vpack.c.b16 %v747, %v746
        %v831 = vpack.c.b16 %v749, %v748
        %v832 = vpack.c.b16 %v751, %v750
        %v833 = vpack.c.b16 %v753, %v752
        %v834 = vpack.c.b16 %v755, %v754
        %v835 = vpack.c.b16 %v757, %v756
        %v836 = vpack.c.b16 %v759, %v758
        %v837 = vpack.c.b16 %v761, %v760
        %v838 = vpack.c.b16 %v763, %v762
        %v839 = vpack.c.b16 %v765, %v764
        %v840 = vpack.c.b16 %v767, %v766
        %v841 = vpack.c.b16 %v769, %v768
        %v842 = vpack.c.b16 %v771, %v770
        %v843 = vpack.c.b16 %v773, %v772
        %v844 = vpack.c.b16 %v775, %v774
        %v845 = vpack.c.b16 %v777, %v776
        %v846 = vpack.c.b16 %v779, %v778
        %v847 = vpack.c.b16 %v781, %v780
        %v848 = vpack.c.b16 %v783, %v782
        %v849 = vpack.c.b16 %v785, %v784
        %v850 = vpack.c.b16 %v787, %v786
        %v851 = vpack.c.b16 %v789, %v788
        %v852 = vpack.c.b16 %v791, %v790
        %v853 = vpack.c.b16 %v793, %v792
        %v854 = vpack.c.b16 %v795, %v794
        %v855 = vpack.c.b16 %v797, %v796
        %v856 = vpack.c.b16 %v799, %v798
        %v857 = vpack.c.b16 %v801, %v800
        %v858 = vpack.c.b16 %v803, %v802
        %v859 = vpack.c.b16 %v805, %v804
        %v860 = vpack.c.b16 %v807, %v806
        %v861 = vpack.c.b16 %v809, %v808
        %v862 = vpack.c.b16 %v811, %v810
        %v863 = vpack.c.b16 %v813, %v812
        %v864 = vpack.c.b16 %v815, %v814
        %v865 = vpack.c.b16 %v817, %v816
        %914 = vmatprep.subr.bf16.mxu0 0
        %915 = vmatpush1.bf16.msra.mxu0 %v825
        %916 = vmatprep.subr.bf16.mxu0 0
        %917 = vmatpush1.bf16.msra.mxu0 %v824
        %918 = vmatprep.subr.bf16.mxu0 0
        %919 = vmatpush1.bf16.msra.mxu0 %v823
        %920 = vmatprep.subr.bf16.mxu0 0
        %921 = vmatpush1.bf16.msra.mxu0 %v822
        %922 = vmatprep.subr.bf16.mxu0 0
        %923 = vmatpush1.bf16.msra.mxu0 %v821
        %924 = vmatprep.subr.bf16.mxu0 0
        %925 = vmatpush1.bf16.msra.mxu0 %v820
        %926 = vmatprep.subr.bf16.mxu0 0
        %927 = vmatpush1.bf16.msra.mxu0 %v819
        %928 = vmatprep.subr.bf16.mxu0 0
        %929 = vmatpush1.bf16.msra.mxu0 %v818
        %930 = vmatprep.subr.bf16.mxu0 0
        %931 = vmatpush2.bf16.msra.mxu0 %v833
        %932 = vmatprep.subr.bf16.mxu0 0
        %933 = vmatpush2.bf16.msra.mxu0 %v832
        %934 = vmatprep.subr.bf16.mxu0 0
        %935 = vmatpush2.bf16.msra.mxu0 %v831
        %936 = vmatprep.subr.bf16.mxu0 0
        %937 = vmatpush2.bf16.msra.mxu0 %v830
        %938 = vmatprep.subr.bf16.mxu0 0
        %939 = vmatpush2.bf16.msra.mxu0 %v829
        %940 = vmatprep.subr.bf16.mxu0 0
        %941 = vmatpush2.bf16.msra.mxu0 %v828
        %942 = vmatprep.subr.bf16.mxu0 0
        %943 = vmatpush2.bf16.msra.mxu0 %v827
        %944 = vmatprep.subr.bf16.mxu0 0
        %945 = vmatpush2.bf16.msra.mxu0 %v826
        %946 = vmatprep.mubr.bf16.mxu0 %v579
        %947 = vmatmul.mubr.bf16.gmra.mxu0 %v578
        %v948 = vpop.f32.mrf.mxu0
        %v949 = vadd.f32 0.0, %v948
        %v950 = vpop.f32.mrf.mxu0
        %v951 = vpop.f32.mrf.mxu0
        %v952 = vadd.f32 0.0, %v951
        %v953 = vpop.f32.mrf.mxu0
        %954 = vmatprep.mubr.bf16.mxu0 %v585
        %955 = vmatmul.mubr.bf16.gmra.mxu0 %v584
        %v956 = vpop.f32.mrf.mxu0
        %v957 = vadd.f32 0.0, %v956
        %v958 = vpop.f32.mrf.mxu0
        %v959 = vpop.f32.mrf.mxu0
        %v960 = vadd.f32 0.0, %v959
        %v961 = vpop.f32.mrf.mxu0
        %962 = vmatprep.mubr.bf16.mxu0 %v591
        %963 = vmatmul.mubr.bf16.gmra.mxu0 %v590
        %v964 = vpop.f32.mrf.mxu0
        %v965 = vadd.f32 0.0, %v964
        %v966 = vpop.f32.mrf.mxu0
        %v967 = vpop.f32.mrf.mxu0
        %v968 = vadd.f32 0.0, %v967
        %v969 = vpop.f32.mrf.mxu0
        %970 = vmatprep.mubr.bf16.mxu0 %v597
        %971 = vmatmul.mubr.bf16.gmra.mxu0 %v596
        %v972 = vpop.f32.mrf.mxu0
        %v973 = vadd.f32 0.0, %v972
        %v974 = vpop.f32.mrf.mxu0
        %v975 = vpop.f32.mrf.mxu0
        %v976 = vadd.f32 0.0, %v975
        %v977 = vpop.f32.mrf.mxu0
        %978 = vdwg.mxu0
        %979 = vmatprep.subr.bf16.mxu0 0
        %980 = vmatpush1.bf16.msra.mxu0 %v841
        %981 = vmatprep.subr.bf16.mxu0 0
        %982 = vmatpush1.bf16.msra.mxu0 %v840
        %983 = vmatprep.subr.bf16.mxu0 0
        %984 = vmatpush1.bf16.msra.mxu0 %v839
        %985 = vmatprep.subr.bf16.mxu0 0
        %986 = vmatpush1.bf16.msra.mxu0 %v838
        %987 = vmatprep.subr.bf16.mxu0 0
        %988 = vmatpush1.bf16.msra.mxu0 %v837
        %989 = vmatprep.subr.bf16.mxu0 0
        %990 = vmatpush1.bf16.msra.mxu0 %v836
        %991 = vmatprep.subr.bf16.mxu0 0
        %992 = vmatpush1.bf16.msra.mxu0 %v835
        %993 = vmatprep.subr.bf16.mxu0 0
        %994 = vmatpush1.bf16.msra.mxu0 %v834
        %995 = vmatprep.subr.bf16.mxu0 0
        %996 = vmatpush2.bf16.msra.mxu0 %v849
        %997 = vmatprep.subr.bf16.mxu0 0
        %998 = vmatpush2.bf16.msra.mxu0 %v848
        %999 = vmatprep.subr.bf16.mxu0 0
        %1000 = vmatpush2.bf16.msra.mxu0 %v847
        %1001 = vmatprep.subr.bf16.mxu0 0
        %1002 = vmatpush2.bf16.msra.mxu0 %v846
        %1003 = vmatprep.subr.bf16.mxu0 0
        %1004 = vmatpush2.bf16.msra.mxu0 %v845
        %1005 = vmatprep.subr.bf16.mxu0 0
        %1006 = vmatpush2.bf16.msra.mxu0 %v844
        %1007 = vmatprep.subr.bf16.mxu0 0
        %1008 = vmatpush2.bf16.msra.mxu0 %v843
        %1009 = vmatprep.subr.bf16.mxu0 0
        %1010 = vmatpush2.bf16.msra.mxu0 %v842
        %1011 = vmatprep.mubr.bf16.mxu0 %v581
        %1012 = vmatmul.mubr.bf16.gmra.mxu0 %v580
        %v1013 = vpop.f32.mrf.mxu0
        %v1014 = vadd.f32 %v949, %v1013
        %v1015 = vpop.f32.mrf.mxu0
        %v1016 = vpop.f32.mrf.mxu0
        %v1017 = vadd.f32 %v952, %v1016
        %v1018 = vpop.f32.mrf.mxu0
        %1019 = vmatprep.mubr.bf16.mxu0 %v587
        %1020 = vmatmul.mubr.bf16.gmra.mxu0 %v586
        %v1021 = vpop.f32.mrf.mxu0
        %v1022 = vadd.f32 %v957, %v1021
        %v1023 = vpop.f32.mrf.mxu0
        %v1024 = vpop.f32.mrf.mxu0
        %v1025 = vadd.f32 %v960, %v1024
        %v1026 = vpop.f32.mrf.mxu0
        %1027 = vmatprep.mubr.bf16.mxu0 %v593
        %1028 = vmatmul.mubr.bf16.gmra.mxu0 %v592
        %v1029 = vpop.f32.mrf.mxu0
        %v1030 = vadd.f32 %v965, %v1029
        %v1031 = vpop.f32.mrf.mxu0
        %v1032 = vpop.f32.mrf.mxu0
        %v1033 = vadd.f32 %v968, %v1032
        %v1034 = vpop.f32.mrf.mxu0
        %1035 = vmatprep.mubr.bf16.mxu0 %v599
        %1036 = vmatmul.mubr.bf16.gmra.mxu0 %v598
        %v1037 = vpop.f32.mrf.mxu0
        %v1038 = vadd.f32 %v973, %v1037
        %v1039 = vpop.f32.mrf.mxu0
        %v1040 = vpop.f32.mrf.mxu0
        %v1041 = vadd.f32 %v976, %v1040
        %v1042 = vpop.f32.mrf.mxu0
        %1043 = vdwg.mxu0
        %1044 = vmatprep.subr.bf16.mxu0 0
        %1045 = vmatpush1.bf16.msra.mxu0 %v857
        %1046 = vmatprep.subr.bf16.mxu0 0
        %1047 = vmatpush1.bf16.msra.mxu0 %v856
        %1048 = vmatprep.subr.bf16.mxu0 0
        %1049 = vmatpush1.bf16.msra.mxu0 %v855
        %1050 = vmatprep.subr.bf16.mxu0 0
        %1051 = vmatpush1.bf16.msra.mxu0 %v854
        %1052 = vmatprep.subr.bf16.mxu0 0
        %1053 = vmatpush1.bf16.msra.mxu0 %v853
        %1054 = vmatprep.subr.bf16.mxu0 0
        %1055 = vmatpush1.bf16.msra.mxu0 %v852
        %1056 = vmatprep.subr.bf16.mxu0 0
        %1057 = vmatpush1.bf16.msra.mxu0 %v851
        %1058 = vmatprep.subr.bf16.mxu0 0
        %1059 = vmatpush1.bf16.msra.mxu0 %v850
        %1060 = vmatprep.subr.bf16.mxu0 0
        %1061 = vmatpush2.bf16.msra.mxu0 %v865
        %1062 = vmatprep.subr.bf16.mxu0 0
        %1063 = vmatpush2.bf16.msra.mxu0 %v864
        %1064 = vmatprep.subr.bf16.mxu0 0
        %1065 = vmatpush2.bf16.msra.mxu0 %v863
        %1066 = vmatprep.subr.bf16.mxu0 0
        %1067 = vmatpush2.bf16.msra.mxu0 %v862
        %1068 = vmatprep.subr.bf16.mxu0 0
        %1069 = vmatpush2.bf16.msra.mxu0 %v861
        %1070 = vmatprep.subr.bf16.mxu0 0
        %1071 = vmatpush2.bf16.msra.mxu0 %v860
        %1072 = vmatprep.subr.bf16.mxu0 0
        %1073 = vmatpush2.bf16.msra.mxu0 %v859
        %1074 = vmatprep.subr.bf16.mxu0 0
        %1075 = vmatpush2.bf16.msra.mxu0 %v858
        %1076 = vmatprep.mubr.bf16.mxu0 %v583
        %1077 = vmatmul.mubr.bf16.gmra.mxu0 %v582
        %v1078 = vpop.f32.mrf.mxu0
        %v1079 = vadd.f32 %v1014, %v1078
        %v1080 = vpop.f32.mrf.mxu0
        %v1081 = vpop.f32.mrf.mxu0
        %v1082 = vadd.f32 %v1017, %v1081
        %v1083 = vpop.f32.mrf.mxu0
        %1084 = vmatprep.mubr.bf16.mxu0 %v589
        %1085 = vmatmul.mubr.bf16.gmra.mxu0 %v588
        %v1086 = vpop.f32.mrf.mxu0
        %v1087 = vadd.f32 %v1022, %v1086
        %v1088 = vpop.f32.mrf.mxu0
        %v1089 = vpop.f32.mrf.mxu0
        %v1090 = vadd.f32 %v1025, %v1089
        %v1091 = vpop.f32.mrf.mxu0
        %1092 = vmatprep.mubr.bf16.mxu0 %v595
        %1093 = vmatmul.mubr.bf16.gmra.mxu0 %v594
        %v1094 = vpop.f32.mrf.mxu0
        %v1095 = vadd.f32 %v1030, %v1094
        %v1096 = vpop.f32.mrf.mxu0
        %v1097 = vpop.f32.mrf.mxu0
        %v1098 = vadd.f32 %v1033, %v1097
        %v1099 = vpop.f32.mrf.mxu0
        %1100 = vmatprep.mubr.bf16.mxu0 %v601
        %1101 = vmatmul.mubr.bf16.gmra.mxu0 %v600
        %v1102 = vpop.f32.mrf.mxu0
        %v1103 = vadd.f32 %v1038, %v1102
        %v1104 = vpop.f32.mrf.mxu0
        %v1105 = vpop.f32.mrf.mxu0
        %v1106 = vadd.f32 %v1041, %v1105
        %v1107 = vpop.f32.mrf.mxu0
        %1108 = vdwg.mxu0
        %v1109 = vadd.f32 %v378, %v1079
        %v1110 = vadd.f32 %v379, %v1082
        %v1111 = vadd.f32 %v380, %v1087
        %v1112 = vadd.f32 %v381, %v1090
        %v1113 = vadd.f32 %v382, %v1095
        %v1114 = vadd.f32 %v383, %v1098
        %v1115 = vadd.f32 %v384, %v1103
        %v1116 = vadd.f32 %v385, %v1106
        %1117 = vst [vmem:[#allocation2] sm:$0xff] %v1109
        %1118 = vst [vmem:[#allocation2 + $0x8] sm:$0xff] %v1110
        %1119 = vst [vmem:[#allocation2 + $0x10] sm:$0xff] %v1111
        %1120 = vst [vmem:[#allocation2 + $0x18] sm:$0xff] %v1112
        %1121 = vst [vmem:[#allocation2 + $0x20] sm:$0xff] %v1113
        %1122 = vst [vmem:[#allocation2 + $0x28] sm:$0xff] %v1114
        %1123 = vst [vmem:[#allocation2 + $0x30] sm:$0xff] %v1115
        %1124 = vst [vmem:[#allocation2 + $0x38] sm:$0xff] %v1116
        %p1125 = scmp.eq.s32.totalorder %s24, 5
        // Predicated region
        $region68: #{_lambda_.1} parent=54 // pred_check
          %p1126 = pneg %p1125
        $region69: #{_lambda_.1} parent=54 // pred_check_branch
          %1128 = sbr.rel (%p1126) target = $region71
        $region70: #{_lambda_.1} parent=54 // pred_region
          %v1129 = vld [vmem:[#allocation2] sm:$0xff]
          %v1130 = vld [vmem:[#allocation2 + $0x8] sm:$0xff]
          %v1131 = vld [vmem:[#allocation2 + $0x10] sm:$0xff]
          %v1132 = vld [vmem:[#allocation2 + $0x18] sm:$0xff]
          %v1133 = vld [vmem:[#allocation2 + $0x20] sm:$0xff]
          %v1134 = vld [vmem:[#allocation2 + $0x28] sm:$0xff]
          %v1135 = vld [vmem:[#allocation2 + $0x30] sm:$0xff]
          %v1136 = vld [vmem:[#allocation2 + $0x38] sm:$0xff]
          %v1137 = vld [vmem:[#allocation4] sm:$0xf]
          %v1138 = vld [vmem:[#allocation4 + $0x4] sm:$0xf]
          %v1139 = vld [vmem:[#allocation4 + $0x8] sm:$0xf]
          %v1140 = vld [vmem:[#allocation4 + $0xc] sm:$0xf]
          %v1141 = vld [vmem:[#allocation4 + $0x10] sm:$0xf]
          %v1142 = vld [vmem:[#allocation4 + $0x14] sm:$0xf]
          %v1143 = vld [vmem:[#allocation4 + $0x18] sm:$0xf]
          %v1144 = vld [vmem:[#allocation4 + $0x1c] sm:$0xf]
          %v1145 = vunpack.c.l.bf16 %v1137
          %v1146 = vunpack.c.l.bf16 %v1138
          %v1147 = vunpack.c.l.bf16 %v1139
          %v1148 = vunpack.c.l.bf16 %v1140
          %v1149 = vunpack.c.l.bf16 %v1141
          %v1150 = vunpack.c.l.bf16 %v1142
          %v1151 = vunpack.c.l.bf16 %v1143
          %v1152 = vunpack.c.l.bf16 %v1144
          %v1153 = vadd.f32 %v1129, %v1145
          %v1154 = vadd.f32 %v1130, %v1146
          %v1155 = vadd.f32 %v1131, %v1147
          %v1156 = vadd.f32 %v1132, %v1148
          %v1157 = vadd.f32 %v1133, %v1149
          %v1158 = vadd.f32 %v1134, %v1150
          %v1159 = vadd.f32 %v1135, %v1151
          %v1160 = vadd.f32 %v1136, %v1152
          %v1161 = vmax.f32 %v1153, 0.0
          %v1162 = vmax.f32 %v1154, 0.0
          %v1163 = vmax.f32 %v1155, 0.0
          %v1164 = vmax.f32 %v1156, 0.0
          %v1165 = vmax.f32 %v1157, 0.0
          %v1166 = vmax.f32 %v1158, 0.0
          %v1167 = vmax.f32 %v1159, 0.0
          %v1168 = vmax.f32 %v1160, 0.0
          %v1169 = vpack.c.bf16 %v1162, %v1161
          %v1170 = vpack.c.bf16 %v1164, %v1163
          %v1171 = vpack.c.bf16 %v1166, %v1165
          %v1172 = vpack.c.bf16 %v1168, %v1167
          %v1177 = vunpack.c.l.b16 %v1169
          %v1178 = vunpack.c.h.b16 %v1169
          %v1179 = vunpack.c.l.b16 %v1170
          %v1180 = vunpack.c.h.b16 %v1170
          %v1181 = vunpack.c.l.b16 %v1171
          %v1182 = vunpack.c.h.b16 %v1171
          %v1183 = vunpack.c.l.b16 %v1172
          %v1184 = vunpack.c.h.b16 %v1172
          %v1185 = vpack.c.b16 %v1177, %v1177
          %v1186 = vpack.c.b16 %v1178, %v1178
          %v1187 = vpack.c.b16 %v1179, %v1179
          %v1188 = vpack.c.b16 %v1180, %v1180
          %v1189 = vpack.c.b16 %v1181, %v1181
          %v1190 = vpack.c.b16 %v1182, %v1182
          %v1191 = vpack.c.b16 %v1183, %v1183
          %v1192 = vpack.c.b16 %v1184, %v1184
          %1201 = vst [vmem:[#allocation7] sm:$0xf] %v1185
          %1202 = vst [vmem:[#allocation7 + $0x4] sm:$0xf] %v1186
          %1203 = vst [vmem:[#allocation7 + $0x8] sm:$0xf] %v1187
          %1204 = vst [vmem:[#allocation7 + $0xc] sm:$0xf] %v1188
          %1205 = vst [vmem:[#allocation7 + $0x10] sm:$0xf] %v1189
          %1206 = vst [vmem:[#allocation7 + $0x14] sm:$0xf] %v1190
          %1207 = vst [vmem:[#allocation7 + $0x18] sm:$0xf] %v1191
          %1208 = vst [vmem:[#allocation7 + $0x1c] sm:$0xf] %v1192
        $region71: #{_lambda_.1} parent=54 // pred_fallthru
          _
        // Predicated region
        $region72: #{_lambda_.1} parent=54 // pred_check
          %p1209 = pneg %p166
        $region73: #{_lambda_.1} parent=54 // pred_check_branch
          %1211 = sbr.rel (%p1209) target = $region75
        $region74: #{_lambda_.1} parent=54 // pred_region
          %s1212 = smul.u32 8, %s22
          %s1214 = ssub.s32 512, 512
          %1215 = vsyncadd [#allocation6], %s1214
          %s1216 = sadd.s32 %s23, %s1212
          %s1217 = smul.addr %s1216, 64
          %s1218 = scalar_lea.hbm %s4, %s1217
          %s1219 = sshll.u32 [#allocation7], 4
          %s1220 = int_to_ptr.vmem [resolvable:$true] %s1219
          %1225 = dma.vmem_to_hbm [thread:$0]  %s1220, 512, %s1218, [#allocation6], 64, 64, 4
        $region75: #{_lambda_.1} parent=54 // pred_fallthru
          _
        // Predicated region
        $region76: #{_lambda_.1} parent=54 // pred_check
          %p1226 = pneg %p166
        $region77: #{_lambda_.1} parent=54 // pred_check_branch
          %1228 = sbr.rel (%p1226) target = $region79
        $region78: #{_lambda_.1} parent=54 // pred_region
          %1229 = dma.done [#allocation6], 512
        $region79: #{_lambda_.1} parent=54 // pred_fallthru
          _
      $region55: #{_lambda_.1} parent=5 // pred_fallthru
        _
      %p1230 = scmp.le.s32.totalorder 2, %s12
      // Predicated region
      $region80: #{_lambda_.1} parent=5 // pred_check
        %p1231 = pneg %p1230
      $region81: #{_lambda_.1} parent=5 // pred_check_branch
        %1233 = sbr.rel (%p1231) target = $region83
      $region82: #{_lambda_.1} parent=5 // pred_region
        %s1234 = ssub.s32 %s12, 2
      $region83: #{_lambda_.1} parent=5 // pred_fallthru
        _
    $region6: #{_lambda_.1} parent=1 // loop_footer
      %s16 = sadd.s32 1, %s12
    $region7: #{_lambda_.1} parent=1 // loop_footer_branch
      %11 = sbr.rel target = $region3
    $region8: #{_lambda_.1} parent=1 // loop_exit
      _
    %1235 = vsyncpa [#allocation5], 1
    %s1236 = scalar_lea.sflag [#allocation5], 1
    %1237 = vsyncpa %s1236, 1
    %1238 = vsyncpa [#allocation6], 1
    %s1239 = scalar_lea.sflag [#allocation6], 1
    %1240 = vsyncpa %s1239, 1

</llo_original>
